<compile_context>
chip_gen: v5e
topology: v5e:2x2
jax: 0.10.0
libtpu: 0.0.40
codegen_flags: <defaults>
</compile_context>

<pallas_src>
import math

import jax
import jax.numpy as jnp
from jax.experimental import pallas as pl
from jax.experimental.pallas import tpu as pltpu

# --- problem sizes (config.*): state flattens to input_size ------------------
KEYBOARD_SHAPE = (2, 16)   # 32 elems
POSITION_SHAPE = (16,)     # 16 elems
POSSIBLE_SHAPE = (4, 4)    # 16 elems
INPUT_SIZE = 2 * 16 + 16 + 4 * 4   # config.input_size = 64
NUM_FEATURES = 32                  # config.num_features

LEAKY_SLOPE = 0.01                 # nn.LeakyReLU() default

# --- lane-padded packing layout ----------------------------------------------
LANE = 128
SUBLANE = 8
TILE_B = 8                                   # batch rows per grid step (mult. of 8)

_W1_ROWS = LANE                              # rows [0, 128): W1 padded (K 64 -> 128)
_B1_ROW = _W1_ROWS                           # row 128: b1 (tile-aligned)
_B2_ROW = _W1_ROWS + SUBLANE                 # row 136: b2 (tile-aligned)
_W2_ROWS_START = _W1_ROWS + 2 * SUBLANE      # rows [144, 272): W2 padded
SLAB_ROWS = _W2_ROWS_START + LANE            # 272 rows total (multiple of 8)


def _leaky_relu(x):
    return jnp.where(x > 0, x, LEAKY_SLOPE * x)


def encoder_kernel(x_ref, p_ref, out_ref):
    """One batch tile: out = dense2(leaky_relu(dense1(x))) on lane-padded data."""
    x = x_ref[...]                                         # (TILE_B, 128) f32
    w1 = p_ref[0:_W1_ROWS, :]                              # (128, 128)
    b1 = p_ref[_B1_ROW:_B1_ROW + 1, :]                     # (1, 128)
    b2 = p_ref[_B2_ROW:_B2_ROW + 1, :]                     # (1, 128)
    w2 = p_ref[_W2_ROWS_START:_W2_ROWS_START + LANE, :]    # (128, 128)

    h = jnp.dot(x, w1, preferred_element_type=jnp.float32) + b1
    h = _leaky_relu(h)
    out_ref[...] = jnp.dot(h, w2, preferred_element_type=jnp.float32) + b2


@jax.jit
def encoder_forward_batched(x_flat, packed):
    """x_flat: (B, INPUT_SIZE) float -> (B, NUM_FEATURES)."""
    b = x_flat.shape[0]
    b_pad = pl.cdiv(b, TILE_B) * TILE_B
    # Pad batch rows to a multiple of 8 and features 64 -> 128 lanes (zeros).
    x_pad = jnp.pad(x_flat.astype(jnp.float32),
                    ((0, b_pad - b), (0, LANE - INPUT_SIZE)))

    out = pl.pallas_call(
        encoder_kernel,
        out_shape=jax.ShapeDtypeStruct((b_pad, LANE), jnp.float32),
        grid_spec=pltpu.PrefetchScalarGridSpec(
            num_scalar_prefetch=0,
            grid=(b_pad // TILE_B,),
            in_specs=[
                pl.BlockSpec((TILE_B, LANE), lambda i: (i, 0)),
                # constant index_map -> weight slab fetched once, resident
                pl.BlockSpec((SLAB_ROWS, LANE), lambda i: (0, 0)),
            ],
            out_specs=pl.BlockSpec((TILE_B, LANE), lambda i: (i, 0)),
        ),
        compiler_params=pltpu.CompilerParams(
            dimension_semantics=("parallel",)),
    )(x_pad, packed)
    return out[:b, :NUM_FEATURES]


def flatten_state(state):
    x_keyboard, x_position, x_possible = state
    return jnp.concatenate([x_keyboard.reshape(-1),
                            x_position.reshape(-1),
                            x_possible.reshape(-1)]).astype(jnp.float32)


def encoder_forward(state, packed):
    """Exact Encoder.forward semantics: one state tuple -> (1, NUM_FEATURES)."""
    x = flatten_state(state).reshape(1, -1)
    return encoder_forward_batched(x, packed)


# --- parameters ---------------------------------------------------------------
def _xavier_uniform(key, fan_in, fan_out):
    a = math.sqrt(6.0 / (fan_in + fan_out))
    return jax.random.uniform(key, (fan_in, fan_out), jnp.float32, -a, a)


def init_params(key):
    k1, k2 = jax.random.split(key, 2)
    w1 = _xavier_uniform(k1, INPUT_SIZE, NUM_FEATURES)     # (64, 32), x @ W layout
    b1 = jnp.zeros((NUM_FEATURES,), jnp.float32)
    w2 = _xavier_uniform(k2, NUM_FEATURES, NUM_FEATURES)   # (32, 32)
    b2 = jnp.zeros((NUM_FEATURES,), jnp.float32)
    return (w1, b1, w2, b2)


def pack_params(params):
    """Zero-pad + pack everything into one lane-dense (272, 128) f32 slab."""
    w1, b1, w2, b2 = params
    slab = jnp.zeros((SLAB_ROWS, LANE), jnp.float32)
    slab = slab.at[:INPUT_SIZE, :NUM_FEATURES].set(w1)
    slab = slab.at[_B1_ROW, :NUM_FEATURES].set(b1)
    slab = slab.at[_B2_ROW, :NUM_FEATURES].set(b2)
    slab = slab.at[_W2_ROWS_START:_W2_ROWS_START + NUM_FEATURES,
                   :NUM_FEATURES].set(w2)
    return slab


# --- pure-JAX reference --------------------------------------------------------
def _reference_forward(x_flat, params):
    w1, b1, w2, b2 = params
    h = _leaky_relu(x_flat @ w1 + b1[None, :])
    return h @ w2 + b2[None, :]


if __name__ == "__main__":
    key = jax.random.PRNGKey(0)
    k_params, k_kb, k_pos, k_poss, k_batch = jax.random.split(key, 5)

    params = init_params(k_params)
    packed = pack_params(params)

    # Single state (the original Encoder call signature).
    state = (
        jax.random.normal(k_kb, KEYBOARD_SHAPE, jnp.float32),
        jax.random.normal(k_pos, POSITION_SHAPE, jnp.float32),
        jax.random.bernoulli(k_poss, 0.5, POSSIBLE_SHAPE).astype(jnp.float32),
    )
    out_single = encoder_forward(state, packed)
    jax.block_until_ready(out_single)

    x_single = flatten_state(state).reshape(1, -1)
    ref_single = _reference_forward(x_single, params)
    assert out_single.shape == (1, NUM_FEATURES)
    assert jnp.allclose(out_single, ref_single, atol=1e-4, rtol=1e-5)

    # Batched path (amortizes launch/DMA; grid=(2,) parallel over batch tiles).
    B = 16
    x_batch = jax.random.normal(k_batch, (B, INPUT_SIZE), jnp.float32)
    out_batch = encoder_forward_batched(x_batch, packed)
    jax.block_until_ready(out_batch)
    ref_batch = _reference_forward(x_batch, params)
    assert out_batch.shape == (B, NUM_FEATURES)
    assert jnp.allclose(out_batch, ref_batch, atol=1e-4, rtol=1e-5)

    print("KERNEL_OK")
</pallas_src>

<mosaic_0001>
module attributes {stable_mosaic.version = 11 : i64} {
  func.func @encoder_kernel(%arg0: i32, %arg1: memref<8x128xf32, #tpu.memory_space<vmem>>, %arg2: memref<272x128xf32, #tpu.memory_space<vmem>>, %arg3: memref<8x128xf32, #tpu.memory_space<vmem>>) attributes {dimension_semantics = [#tpu.dimension_semantics<parallel>], iteration_bounds = array<i64: 1>, scalar_prefetch = 0 : i64, scratch_operands = 0 : i64, tpu.core_type = #tpu.core_type<tc>, window_params = [{transform_indices = @transform_0, window_bounds = array<i64: 8, 128>}, {pipeline_mode = #tpu.pipeline_mode<synchronous>, transform_indices = @transform_1, window_bounds = array<i64: 272, 128>}, {transform_indices = @transform_2, window_bounds = array<i64: 8, 128>}]} {
    %c0 = arith.constant 0 : index
    %c0_0 = arith.constant 0 : index
    %0 = vector.load %arg1[%c0, %c0_0] : memref<8x128xf32, #tpu.memory_space<vmem>>, vector<8x128xf32>
    %c0_1 = arith.constant 0 : index
    %c0_2 = arith.constant 0 : index
    %1 = vector.load %arg2[%c0_1, %c0_2] : memref<272x128xf32, #tpu.memory_space<vmem>>, vector<128x128xf32>
    %c128 = arith.constant 128 : index
    %c0_3 = arith.constant 0 : index
    %2 = vector.load %arg2[%c128, %c0_3] : memref<272x128xf32, #tpu.memory_space<vmem>>, vector<1x128xf32>
    %c136 = arith.constant 136 : index
    %c0_4 = arith.constant 0 : index
    %3 = vector.load %arg2[%c136, %c0_4] : memref<272x128xf32, #tpu.memory_space<vmem>>, vector<1x128xf32>
    %c144 = arith.constant 144 : index
    %c0_5 = arith.constant 0 : index
    %4 = vector.load %arg2[%c144, %c0_5] : memref<272x128xf32, #tpu.memory_space<vmem>>, vector<128x128xf32>
    %cst = arith.constant dense<0.000000e+00> : vector<8x128xf32>
    %5 = tpu.matmul %0, %1, %cst {dimension_numbers = #tpu.dot_dimension_numbers<[1], [0], [0], [1], [0, 0, 1, 1], [], []>} : vector<8x128xf32>, vector<128x128xf32>, vector<8x128xf32> -> vector<8x128xf32>
    %6 = vector.broadcast %2 : vector<1x128xf32> to vector<8x128xf32>
    %7 = arith.addf %5, %6 : vector<8x128xf32>
    %cst_6 = arith.constant 0.000000e+00 : f32
    %8 = vector.broadcast %cst_6 : f32 to vector<8x128xf32>
    %9 = arith.cmpf ogt, %7, %8 : vector<8x128xf32>
    %cst_7 = arith.constant 0.00999999977 : f32
    %10 = vector.broadcast %cst_7 : f32 to vector<8x128xf32>
    %11 = arith.mulf %10, %7 : vector<8x128xf32>
    %12 = arith.select %9, %7, %11 : vector<8x128xi1>, vector<8x128xf32>
    %cst_8 = arith.constant dense<0.000000e+00> : vector<8x128xf32>
    %13 = tpu.matmul %12, %4, %cst_8 {dimension_numbers = #tpu.dot_dimension_numbers<[1], [0], [0], [1], [0, 0, 1, 1], [], []>} : vector<8x128xf32>, vector<128x128xf32>, vector<8x128xf32> -> vector<8x128xf32>
    %14 = vector.broadcast %3 : vector<1x128xf32> to vector<8x128xf32>
    %15 = arith.addf %13, %14 : vector<8x128xf32>
    %c0_9 = arith.constant 0 : index
    %c0_10 = arith.constant 0 : index
    %16 = vector.load %arg3[%c0_9, %c0_10] : memref<8x128xf32, #tpu.memory_space<vmem>>, vector<8x128xf32>
    tpu.vector_store %arg3[%c0_9, %c0_10], %15 {strides = array<i32>} : memref<8x128xf32, #tpu.memory_space<vmem>>, vector<8x128xf32>,
    return
  }
  func.func @transform_0(%arg0: i32) -> (i32, i32) {
    %c0_i32 = arith.constant 0 : i32
    %c0_i32_0 = arith.constant 0 : i32
    return %arg0, %c0_i32 : i32, i32
  }
  func.func @transform_1(%arg0: i32) -> (i32, i32) {
    %c0_i32 = arith.constant 0 : i32
    %c0_i32_0 = arith.constant 0 : i32
    %c0_i32_1 = arith.constant 0 : i32
    return %c0_i32, %c0_i32_0 : i32, i32
  }
  func.func @transform_2(%arg0: i32) -> (i32, i32) {
    %c0_i32 = arith.constant 0 : i32
    %c0_i32_0 = arith.constant 0 : i32
    return %arg0, %c0_i32 : i32, i32
  }
}

</mosaic_0001>

<llo_original>
// kernel: encoder_forward_batched.1
$region0: #{encoder_forward_batched.1}
  #allocation0 [shape = 'u32[]', space=smem, size = 0x4, offset = 0x4, fixed_abs, tag = 'smem constant byte address 0x4 - core index']
  #allocation1 [shape = 'u32[72,128]{1,0:T(1,128)}', space=vmem, size = 0x9000, scoped, tag = 'internal scratch']
  %s0 = inlined_call_operand.vmem [shape: f32[8,128], index: 0, kind: input, shape index: {}]
  %s1 = inlined_call_operand.hbm [shape: f32[272,128], index: 1, kind: input, shape index: {}]
  %s2 = inlined_call_operand.vmem [shape: f32[8,128], index: 2, kind: output, shape index: {}]
  %s3 = sld [smem:[#allocation0]]
  $region22: #{encoder_forward_batched.1} parent=0
    _
  %s5 = ssub.s32 1, %s3
  %s6 = scalar_select 0, %s5, %s3
  $region1: #{encoder_forward_batched.1} parent=0
    #allocation2 [shape = 'u8[139264]{0}', space=vmem, size = 0x22000, scoped, tag = 'input window, operand 1, single buffered']
    #allocation3 [shape = 's32[1]{0}', space=sflag, size = 0x4, scoped, tag = 'scoped memory for encoder_forward_batched.1']
    %7 = vsyncpa [#allocation3], 0
    // Predicated region
    $region2: #{encoder_forward_batched.1} parent=1 // pred_check
      _
    $region3: #{encoder_forward_batched.1} parent=1 // pred_check_branch
      %9 = sbr.rel (0) target = $region5
    $region4: #{encoder_forward_batched.1} parent=1 // pred_region
      _
    $region5: #{encoder_forward_batched.1} parent=1 // pred_fallthru
      _
    // Predicated region
    $region6: #{encoder_forward_batched.1} parent=1 // pred_check
      _
    $region7: #{encoder_forward_batched.1} parent=1 // pred_check_branch
      %11 = sbr.rel (0) target = $region9
    $region8: #{encoder_forward_batched.1} parent=1 // pred_region
      %13 = vsyncadd [#allocation3], 0
      %s14 = sshll.u32 %s1, 4
      %s15 = int_to_ptr.hbm [resolvable:$true] %s14
      %s16 = sshll.u32 [#allocation2], 4
      %s17 = int_to_ptr.vmem [resolvable:$true] %s16
      %22 = dma.hbm_to_vmem [thread:$0]  %s15, 4352, %s17, [#allocation3], 128, 128, 8
    $region9: #{encoder_forward_batched.1} parent=1 // pred_fallthru
      _
    // Predicated region
    $region10: #{encoder_forward_batched.1} parent=1 // pred_check
      _
    $region11: #{encoder_forward_batched.1} parent=1 // pred_check_branch
      %24 = sbr.rel (0) target = $region13
    $region12: #{encoder_forward_batched.1} parent=1 // pred_region
      %26 = dma.done [#allocation3], 4352
    $region13: #{encoder_forward_batched.1} parent=1 // pred_fallthru
      _
    %v27 = vld [vmem:[%s0] sm:$0xff]
    %v28 = vld [vmem:[#allocation2] sm:$0xff]
    %v29 = vld [vmem:[#allocation2 + $0x8] sm:$0xff]
    %v30 = vld [vmem:[#allocation2 + $0x10] sm:$0xff]
    %v31 = vld [vmem:[#allocation2 + $0x18] sm:$0xff]
    %v32 = vld [vmem:[#allocation2 + $0x20] sm:$0xff]
    %v33 = vld [vmem:[#allocation2 + $0x28] sm:$0xff]
    %v34 = vld [vmem:[#allocation2 + $0x30] sm:$0xff]
    %v35 = vld [vmem:[#allocation2 + $0x38] sm:$0xff]
    %v36 = vld [vmem:[#allocation2 + $0x40] sm:$0xff]
    %v37 = vld [vmem:[#allocation2 + $0x48] sm:$0xff]
    %v38 = vld [vmem:[#allocation2 + $0x50] sm:$0xff]
    %v39 = vld [vmem:[#allocation2 + $0x58] sm:$0xff]
    %v40 = vld [vmem:[#allocation2 + $0x60] sm:$0xff]
    %v41 = vld [vmem:[#allocation2 + $0x68] sm:$0xff]
    %v42 = vld [vmem:[#allocation2 + $0x70] sm:$0xff]
    %v43 = vld [vmem:[#allocation2 + $0x78] sm:$0xff]
    %v44 = vld [vmem:[#allocation2 + $0x80] sm:$0x1]
    %v45 = vld [vmem:[#allocation2 + $0x88] sm:$0x1]
    %v46 = vld [vmem:[#allocation2 + $0x90] sm:$0xff]
    %v47 = vld [vmem:[#allocation2 + $0x98] sm:$0xff]
    %v48 = vld [vmem:[#allocation2 + $0xa0] sm:$0xff]
    %v49 = vld [vmem:[#allocation2 + $0xa8] sm:$0xff]
    %v50 = vld [vmem:[#allocation2 + $0xb0] sm:$0xff]
    %v51 = vld [vmem:[#allocation2 + $0xb8] sm:$0xff]
    %v52 = vld [vmem:[#allocation2 + $0xc0] sm:$0xff]
    %v53 = vld [vmem:[#allocation2 + $0xc8] sm:$0xff]
    %v54 = vld [vmem:[#allocation2 + $0xd0] sm:$0xff]
    %v55 = vld [vmem:[#allocation2 + $0xd8] sm:$0xff]
    %v56 = vld [vmem:[#allocation2 + $0xe0] sm:$0xff]
    %v57 = vld [vmem:[#allocation2 + $0xe8] sm:$0xff]
    %v58 = vld [vmem:[#allocation2 + $0xf0] sm:$0xff]
    %v59 = vld [vmem:[#allocation2 + $0xf8] sm:$0xff]
    %v60 = vld [vmem:[#allocation2 + $0x100] sm:$0xff]
    %v61 = vld [vmem:[#allocation2 + $0x108] sm:$0xff]
    %v62 = vperm.slane %v44, 0
    %63 = vmatpush.msra.mxu0 %v43
    %64 = vmatpush.msra.mxu0 %v42
    %65 = vmatpush.msra.mxu0 %v41
    %66 = vmatpush.msra.mxu0 %v40
    %67 = vmatpush.msra.mxu0 %v39
    %68 = vmatpush.msra.mxu0 %v38
    %69 = vmatpush.msra.mxu0 %v37
    %70 = vmatpush.msra.mxu0 %v36
    %71 = vmatpush.msra.mxu0 %v35
    %72 = vmatpush.msra.mxu0 %v34
    %73 = vmatpush.msra.mxu0 %v33
    %74 = vmatpush.msra.mxu0 %v32
    %75 = vmatpush.msra.mxu0 %v31
    %76 = vmatpush.msra.mxu0 %v30
    %77 = vmatpush.msra.mxu0 %v29
    %78 = vmatpush.msra.mxu0 %v28
    %79 = vmatmul.f32.gmra.mxu0 %v27
    %v80 = vpop.f32.mrf.mxu0
    %v81 = vadd.f32 %v62, %v80
    %82 = vdwg.mxu0
    %vm83 = vcmp.gt.f32.partialorder %v81, 0.0
    %v84 = vmul.f32 %v81, 0.01
    %v85 = vsel %vm83, %v81, %v84
    %v86 = vperm.slane %v45, 0
    %87 = vmatpush.msra.mxu0 %v61
    %88 = vmatpush.msra.mxu0 %v60
    %89 = vmatpush.msra.mxu0 %v59
    %90 = vmatpush.msra.mxu0 %v58
    %91 = vmatpush.msra.mxu0 %v57
    %92 = vmatpush.msra.mxu0 %v56
    %93 = vmatpush.msra.mxu0 %v55
    %94 = vmatpush.msra.mxu0 %v54
    %95 = vmatpush.msra.mxu0 %v53
    %96 = vmatpush.msra.mxu0 %v52
    %97 = vmatpush.msra.mxu0 %v51
    %98 = vmatpush.msra.mxu0 %v50
    %99 = vmatpush.msra.mxu0 %v49
    %100 = vmatpush.msra.mxu0 %v48
    %101 = vmatpush.msra.mxu0 %v47
    %102 = vmatpush.msra.mxu0 %v46
    %103 = vmatmul.f32.gmra.mxu0 %v85
    %v104 = vpop.f32.mrf.mxu0
    %v105 = vadd.f32 %v86, %v104
    %106 = vdwg.mxu0
    %107 = vst [vmem:[%s2] sm:$0xff] %v105
    // Predicated region
    $region14: #{encoder_forward_batched.1} parent=1 // pred_check
      _
    $region15: #{encoder_forward_batched.1} parent=1 // pred_check_branch
      %109 = sbr.rel (0) target = $region17
    $region16: #{encoder_forward_batched.1} parent=1 // pred_region
      _
    $region17: #{encoder_forward_batched.1} parent=1 // pred_fallthru
      _
    // Predicated region
    $region18: #{encoder_forward_batched.1} parent=1 // pred_check
      _
    $region19: #{encoder_forward_batched.1} parent=1 // pred_check_branch
      %111 = sbr.rel (0) target = $region21
    $region20: #{encoder_forward_batched.1} parent=1 // pred_region
      _
    $region21: #{encoder_forward_batched.1} parent=1 // pred_fallthru
      _
    %112 = vsyncpa [#allocation3], 1

</llo_original>
